<compile_context>
chip_gen: v6e
topology: v6e:2x2x1
jax: 0.10.0
libtpu: 0.0.40
codegen_flags: <defaults>
</compile_context>

<pallas_src>
import jax
import jax.numpy as jnp
from jax.experimental import pallas as pl
from jax.experimental.pallas import tpu as pltpu

F_IN = 5
F_OUT = 2


def net_kernel(w_ref, b_ref, x_ref, o_ref):
    # w_ref: SMEM (F_OUT, F_IN)   (PyTorch Linear layout: [out, in])
    # b_ref: SMEM (F_OUT,)
    # x_ref: VMEM (F_IN, TILE_N)  lane-dense node axis
    # o_ref: VMEM (F_OUT, TILE_N)

    # Load the feature rows once; each row is a (1, TILE_N) lane-dense slab.
    rows = [x_ref[pl.ds(k, 1), :] for k in range(F_IN)]

    # Unrolled VPU multiply-adds: z_j = sum_k w[j,k] * x[k,:] + b[j]
    zs = []
    for j in range(F_OUT):
        z = rows[0] * w_ref[j, 0]
        for k in range(1, F_IN):
            z = z + rows[k] * w_ref[j, k]
        zs.append(z + b_ref[j])
    z0, z1 = zs

    # 2-class log_softmax (numerically stable, no cross-lane reduce):
    #   lse = max(z0, z1) + log(1 + exp(-|z0 - z1|))
    m = jnp.maximum(z0, z1)
    lse = m + jnp.log(1.0 + jnp.exp(-jnp.abs(z0 - z1)))

    o_ref[...] = jnp.concatenate([z0 - lse, z1 - lse], axis=0).astype(o_ref.dtype)


def net_forward(x, weight, bias, *, tile_n=1024):
    """Forward pass of Net.

    x:      (N, 5)  float32 node-feature matrix
    weight: (2, 5)  float32 (PyTorch Linear layout: [out_features, in_features])
    bias:   (2,)    float32
    returns (N, 2)  float32 = log_softmax(x @ weight.T + bias, axis=1)
    """
    n, f_in = x.shape
    f_out = weight.shape[0]
    assert f_in == F_IN and f_out == F_OUT
    assert tile_n % 128 == 0, "tile_n must be a multiple of 128 (lane width)"

    # Pad the node axis so it tiles evenly, and present it as the lane axis.
    num_tiles = pl.cdiv(n, tile_n)
    n_pad = num_tiles * tile_n
    xt = jnp.zeros((f_in, n_pad), jnp.float32).at[:, :n].set(x.T)

    out_t = pl.pallas_call(
        net_kernel,
        out_shape=jax.ShapeDtypeStruct((f_out, n_pad), jnp.float32),
        grid=(num_tiles,),
        in_specs=[
            pl.BlockSpec(memory_space=pltpu.MemorySpace.SMEM),   # weight (2,5)
            pl.BlockSpec(memory_space=pltpu.MemorySpace.SMEM),   # bias   (2,)
            pl.BlockSpec((f_in, tile_n), lambda i: (0, i)),      # x tile
        ],
        out_specs=pl.BlockSpec((f_out, tile_n), lambda i: (0, i)),
        compiler_params=pltpu.CompilerParams(
            dimension_semantics=("parallel",)),
    )(weight, bias, xt)

    # Un-pad and transpose back to (N, 2).
    return out_t[:, :n].T


def reference_forward(x, weight, bias):
    z = x @ weight.T + bias
    return jax.nn.log_softmax(z, axis=1)


if __name__ == "__main__":
    key = jax.random.PRNGKey(0)
    k_x, k_w, k_b = jax.random.split(key, 3)

    # Small synthetic "twi22X" node-feature matrix (replaces the CSV load).
    # TODO(synk): edge_index is unused by the original forward(), so it is not
    # materialized here.
    num_nodes, f_in, f_out = 300, F_IN, F_OUT

    x = jax.random.normal(k_x, (num_nodes, f_in), dtype=jnp.float32)

    # Deterministic Linear(5, 2) params, PyTorch-style uniform(-1/sqrt(fan_in), +)
    bound = 1.0 / jnp.sqrt(jnp.float32(f_in))
    weight = jax.random.uniform(k_w, (f_out, f_in), jnp.float32, -bound, bound)
    bias = jax.random.uniform(k_b, (f_out,), jnp.float32, -bound, bound)

    # tile_n=256 so the small example still exercises a multi-step grid.
    out = net_forward(x, weight, bias, tile_n=256)
    out = jax.block_until_ready(out)

    ref = reference_forward(x, weight, bias)
    assert out.shape == (num_nodes, f_out)
    assert jnp.allclose(out, ref, atol=1e-5, rtol=1e-5), "mismatch vs reference"

    print("KERNEL_OK")
</pallas_src>

<mosaic_0001>
module attributes {stable_mosaic.version = 11 : i64} {
  func.func @net_kernel(%arg0: i32, %arg1: memref<2x5xf32, #tpu.memory_space<smem>>, %arg2: memref<2xf32, #tpu.memory_space<smem>>, %arg3: memref<5x256xf32, #tpu.memory_space<vmem>>, %arg4: memref<2x256xf32, #tpu.memory_space<vmem>>) attributes {dimension_semantics = [#tpu.dimension_semantics<parallel>], iteration_bounds = array<i64: 2>, scalar_prefetch = 0 : i64, scratch_operands = 0 : i64, tpu.core_type = #tpu.core_type<tc>, window_params = [{transform_indices = @transform_0, window_bounds = array<i64: 2, 5>}, {transform_indices = @transform_1, window_bounds = array<i64: 2>}, {transform_indices = @transform_2, window_bounds = array<i64: 5, 256>}, {transform_indices = @transform_3, window_bounds = array<i64: 2, 256>}]} {
    %c0 = arith.constant 0 : index
    %c0_0 = arith.constant 0 : index
    %0 = vector.load %arg3[%c0, %c0_0] : memref<5x256xf32, #tpu.memory_space<vmem>>, vector<1x256xf32>
    %c1 = arith.constant 1 : index
    %c0_1 = arith.constant 0 : index
    %1 = vector.load %arg3[%c1, %c0_1] : memref<5x256xf32, #tpu.memory_space<vmem>>, vector<1x256xf32>
    %c2 = arith.constant 2 : index
    %c0_2 = arith.constant 0 : index
    %2 = vector.load %arg3[%c2, %c0_2] : memref<5x256xf32, #tpu.memory_space<vmem>>, vector<1x256xf32>
    %c3 = arith.constant 3 : index
    %c0_3 = arith.constant 0 : index
    %3 = vector.load %arg3[%c3, %c0_3] : memref<5x256xf32, #tpu.memory_space<vmem>>, vector<1x256xf32>
    %c4 = arith.constant 4 : index
    %c0_4 = arith.constant 0 : index
    %4 = vector.load %arg3[%c4, %c0_4] : memref<5x256xf32, #tpu.memory_space<vmem>>, vector<1x256xf32>
    %c0_5 = arith.constant 0 : index
    %c0_6 = arith.constant 0 : index
    %5 = memref.load %arg1[%c0_5, %c0_6] : memref<2x5xf32, #tpu.memory_space<smem>>
    %6 = vector.broadcast %5 : f32 to vector<1x256xf32>
    %7 = arith.mulf %0, %6 : vector<1x256xf32>
    %c0_7 = arith.constant 0 : index
    %c1_8 = arith.constant 1 : index
    %8 = memref.load %arg1[%c0_7, %c1_8] : memref<2x5xf32, #tpu.memory_space<smem>>
    %9 = vector.broadcast %8 : f32 to vector<1x256xf32>
    %10 = arith.mulf %1, %9 : vector<1x256xf32>
    %11 = arith.addf %7, %10 : vector<1x256xf32>
    %c0_9 = arith.constant 0 : index
    %c2_10 = arith.constant 2 : index
    %12 = memref.load %arg1[%c0_9, %c2_10] : memref<2x5xf32, #tpu.memory_space<smem>>
    %13 = vector.broadcast %12 : f32 to vector<1x256xf32>
    %14 = arith.mulf %2, %13 : vector<1x256xf32>
    %15 = arith.addf %11, %14 : vector<1x256xf32>
    %c0_11 = arith.constant 0 : index
    %c3_12 = arith.constant 3 : index
    %16 = memref.load %arg1[%c0_11, %c3_12] : memref<2x5xf32, #tpu.memory_space<smem>>
    %17 = vector.broadcast %16 : f32 to vector<1x256xf32>
    %18 = arith.mulf %3, %17 : vector<1x256xf32>
    %19 = arith.addf %15, %18 : vector<1x256xf32>
    %c0_13 = arith.constant 0 : index
    %c4_14 = arith.constant 4 : index
    %20 = memref.load %arg1[%c0_13, %c4_14] : memref<2x5xf32, #tpu.memory_space<smem>>
    %21 = vector.broadcast %20 : f32 to vector<1x256xf32>
    %22 = arith.mulf %4, %21 : vector<1x256xf32>
    %23 = arith.addf %19, %22 : vector<1x256xf32>
    %c0_15 = arith.constant 0 : index
    %24 = memref.load %arg2[%c0_15] : memref<2xf32, #tpu.memory_space<smem>>
    %25 = vector.broadcast %24 : f32 to vector<1x256xf32>
    %26 = arith.addf %23, %25 : vector<1x256xf32>
    %c1_16 = arith.constant 1 : index
    %c0_17 = arith.constant 0 : index
    %27 = memref.load %arg1[%c1_16, %c0_17] : memref<2x5xf32, #tpu.memory_space<smem>>
    %28 = vector.broadcast %27 : f32 to vector<1x256xf32>
    %29 = arith.mulf %0, %28 : vector<1x256xf32>
    %c1_18 = arith.constant 1 : index
    %c1_19 = arith.constant 1 : index
    %30 = memref.load %arg1[%c1_18, %c1_19] : memref<2x5xf32, #tpu.memory_space<smem>>
    %31 = vector.broadcast %30 : f32 to vector<1x256xf32>
    %32 = arith.mulf %1, %31 : vector<1x256xf32>
    %33 = arith.addf %29, %32 : vector<1x256xf32>
    %c1_20 = arith.constant 1 : index
    %c2_21 = arith.constant 2 : index
    %34 = memref.load %arg1[%c1_20, %c2_21] : memref<2x5xf32, #tpu.memory_space<smem>>
    %35 = vector.broadcast %34 : f32 to vector<1x256xf32>
    %36 = arith.mulf %2, %35 : vector<1x256xf32>
    %37 = arith.addf %33, %36 : vector<1x256xf32>
    %c1_22 = arith.constant 1 : index
    %c3_23 = arith.constant 3 : index
    %38 = memref.load %arg1[%c1_22, %c3_23] : memref<2x5xf32, #tpu.memory_space<smem>>
    %39 = vector.broadcast %38 : f32 to vector<1x256xf32>
    %40 = arith.mulf %3, %39 : vector<1x256xf32>
    %41 = arith.addf %37, %40 : vector<1x256xf32>
    %c1_24 = arith.constant 1 : index
    %c4_25 = arith.constant 4 : index
    %42 = memref.load %arg1[%c1_24, %c4_25] : memref<2x5xf32, #tpu.memory_space<smem>>
    %43 = vector.broadcast %42 : f32 to vector<1x256xf32>
    %44 = arith.mulf %4, %43 : vector<1x256xf32>
    %45 = arith.addf %41, %44 : vector<1x256xf32>
    %c1_26 = arith.constant 1 : index
    %46 = memref.load %arg2[%c1_26] : memref<2xf32, #tpu.memory_space<smem>>
    %47 = vector.broadcast %46 : f32 to vector<1x256xf32>
    %48 = arith.addf %45, %47 : vector<1x256xf32>
    %49 = arith.maximumf %26, %48 : vector<1x256xf32>
    %50 = arith.subf %26, %48 : vector<1x256xf32>
    %51 = math.absf %50 : vector<1x256xf32>
    %cst = arith.constant 0.000000e+00 : f32
    %52 = vector.broadcast %cst : f32 to vector<1x256xf32>
    %53 = arith.subf %52, %51 : vector<1x256xf32>
    %54 = math.exp %53 : vector<1x256xf32>
    %cst_27 = arith.constant 1.000000e+00 : f32
    %55 = vector.broadcast %cst_27 : f32 to vector<1x256xf32>
    %56 = arith.addf %55, %54 : vector<1x256xf32>
    %57 = math.log %56 : vector<1x256xf32>
    %58 = arith.addf %49, %57 : vector<1x256xf32>
    %59 = arith.subf %26, %58 : vector<1x256xf32>
    %60 = arith.subf %48, %58 : vector<1x256xf32>
    %61 = tpu.concatenate %59, %60 in 0 : vector<1x256xf32>, vector<1x256xf32> -> vector<2x256xf32>
    %c0_28 = arith.constant 0 : index
    %c0_29 = arith.constant 0 : index
    %62 = vector.load %arg4[%c0_28, %c0_29] : memref<2x256xf32, #tpu.memory_space<vmem>>, vector<2x256xf32>
    tpu.vector_store %arg4[%c0_28, %c0_29], %61 {strides = array<i32>} : memref<2x256xf32, #tpu.memory_space<vmem>>, vector<2x256xf32>,
    return
  }
  func.func @transform_0(%arg0: i32) -> (i32, i32) {
    %c0_i32 = arith.constant 0 : i32
    %c0_i32_0 = arith.constant 0 : i32
    %c0_i32_1 = arith.constant 0 : i32
    return %c0_i32, %c0_i32_0 : i32, i32
  }
  func.func @transform_1(%arg0: i32) -> i32 {
    %c0_i32 = arith.constant 0 : i32
    %c0_i32_0 = arith.constant 0 : i32
    return %c0_i32 : i32
  }
  func.func @transform_2(%arg0: i32) -> (i32, i32) {
    %c0_i32 = arith.constant 0 : i32
    %c0_i32_0 = arith.constant 0 : i32
    return %c0_i32, %arg0 : i32, i32
  }
  func.func @transform_3(%arg0: i32) -> (i32, i32) {
    %c0_i32 = arith.constant 0 : i32
    %c0_i32_0 = arith.constant 0 : i32
    return %c0_i32, %arg0 : i32, i32
  }
}

</mosaic_0001>

<llo_original>
// kernel: tpu_custom_call.1
$region0: #{tpu_custom_call.1}
  #allocation0 [shape = 'u32[]', space=smem, size = 0x4, offset = 0x4, fixed_abs, tag = 'smem constant byte address 0x4 - core index']
  #allocation1 [shape = 'u32[144,128]{1,0:T(1,128)}', space=vmem, size = 0x12000, scoped, tag = 'internal scratch']
  %s0 = inlined_call_operand.hbm [shape: f32[2,5], index: 0, kind: input, shape index: {}]
  %s1 = inlined_call_operand.vmem [shape: f32[2], index: 1, kind: input, shape index: {}]
  %s2 = inlined_call_operand.hbm [shape: f32[5,512], index: 2, kind: input, shape index: {}]
  %s3 = inlined_call_operand.hbm [shape: f32[2,512], index: 3, kind: output, shape index: {}]
  %s4 = sld [smem:[#allocation0]]
  $region57: #{tpu_custom_call.1} parent=0
    _
  %s6 = ssub.s32 1, %s4
  %s7 = scalar_select 0, %s6, %s4
  $region1: #{tpu_custom_call.1} parent=0
    #allocation2 [shape = 'u8[1024]{0}', space=smem, size = 0x400, scoped, tag = 'input window, operand 0, single buffered']
    #allocation3 [shape = 's32[2]{0}', space=sflag, size = 0x8, scoped, tag = 'scoped memory for tpu_custom_call.1']
    #allocation4 [shape = 's32[2]{0}', space=sflag, size = 0x8, scoped, tag = 'scoped memory for tpu_custom_call.1']
    #allocation5 [shape = 's32[2]{0}', space=sflag, size = 0x8, scoped, tag = 'scoped memory for tpu_custom_call.1']
    #allocation6 [shape = 's32[2]{0}', space=sflag, size = 0x8, scoped, tag = 'scoped memory for tpu_custom_call.1']
    #allocation7 [shape = 'u8[512]{0}', space=smem, size = 0x200, scoped, tag = 'input window, operand 1, single buffered']
    #allocation8 [shape = 'u8[16384]{0}', space=vmem, size = 0x4000, scoped, tag = 'input window, operand 2']
    #allocation9 [shape = 'u8[4096]{0}', space=vmem, size = 0x1000, scoped, tag = 'output window, operand 0']
    %8 = vsyncpa [#allocation5], 0
    %9 = vsyncpa [#allocation6], 0
    %10 = vsyncpa [#allocation3], 0
    %s11 = scalar_lea.sflag [#allocation3], 1
    %12 = vsyncpa %s11, 0
    %13 = vsyncpa [#allocation4], 0
    %s14 = scalar_lea.sflag [#allocation4], 1
    %15 = vsyncpa %s14, 0
    loop: start=0, step=1, limit=4
    $region2: #{tpu_custom_call.1} parent=1 // loop_pre_header
      _
    $region3: #{tpu_custom_call.1} parent=1 // loop_header
      %s17 = sphi 0, %s21
      %p18 = scmp.ge.s32.totalorder %s17, 4
      %s25 = sphi 0, %s25
      %s27 = sphi 0, %s25
      %s28 = sphi 0, %s27
      %s42 = sphi 0, %s28
      %s46 = sphi 0, %s46
      %s48 = sphi 0, %s46
      %s49 = sphi 0, %s48
      %s63 = sphi 0, %s49
      %s69 = sphi 0, %s71
      %s72 = sphi 0, %s69
      %s73 = sphi 0, %s72
      %s89 = sphi 0, %s73
      %s95 = sphi 0, %s97
      %s98 = sphi 0, %s95
      %s99 = sphi 0, %s98
      %s115 = sphi 0, %s99
    $region4: #{tpu_custom_call.1} parent=1 // loop_header_branch
      %20 = sbr.rel (%p18) target = $region8
    $region5: #{tpu_custom_call.1} parent=1 // loop_body
      %s22 = ssub.s32 %s17, 1
      %s23 = ssub.s32 %s17, 2
      %s24 = sadd.s32 %s17, 1
      %s26 = sadd.s32 %s25, 1
      %p29 = scmp.eq.s32.totalorder %s17, 1
      %p30 = scmp.ne.s32.totalorder %s25, %s27
      %p31 = scmp.eq.s32.totalorder %s17, 0
      %p32 = por %p30, %p31
      %p33 = scmp.ne.s32.totalorder %s25, %s27
      %p34 = scmp.eq.s32.totalorder %s22, 1
      %p35 = por %p33, %p34
      %p36 = scmp.ne.s32.totalorder %s27, %s28
      %p37 = scmp.eq.s32.totalorder %s22, 0
      %p38 = por %p36, %p37
      %p39 = scmp.ne.s32.totalorder %s27, %s28
      %p40 = scmp.eq.s32.totalorder %s23, 1
      %p41 = por %p39, %p40
      %p43 = scmp.ne.s32.totalorder %s28, %s42
      %p44 = scmp.eq.s32.totalorder %s23, 0
      %p45 = por %p43, %p44
      %s47 = sadd.s32 %s46, 1
      %p50 = scmp.eq.s32.totalorder %s17, 1
      %p51 = scmp.ne.s32.totalorder %s46, %s48
      %p52 = scmp.eq.s32.totalorder %s17, 0
      %p53 = por %p51, %p52
      %p54 = scmp.ne.s32.totalorder %s46, %s48
      %p55 = scmp.eq.s32.totalorder %s22, 1
      %p56 = por %p54, %p55
      %p57 = scmp.ne.s32.totalorder %s48, %s49
      %p58 = scmp.eq.s32.totalorder %s22, 0
      %p59 = por %p57, %p58
      %p60 = scmp.ne.s32.totalorder %s48, %s49
      %p61 = scmp.eq.s32.totalorder %s23, 1
      %p62 = por %p60, %p61
      %p64 = scmp.ne.s32.totalorder %s49, %s63
      %p65 = scmp.eq.s32.totalorder %s23, 0
      %p66 = por %p64, %p65
      %s67 = ssub.s32 %s17, %s24
      %p68 = scmp.eq.s32.totalorder %s67, 0
      %s70 = sadd.s32 %s69, 1
      %s71 = scalar_select %p68, %s69, %s70
      %p74 = pneg %p68
      %p75 = scmp.eq.s32.totalorder %s17, 1
      %p76 = por %p74, %p75
      %p77 = scmp.ne.s32.totalorder %s69, %s72
      %p78 = scmp.eq.s32.totalorder %s17, 0
      %p79 = por %p77, %p78
      %p80 = scmp.ne.s32.totalorder %s69, %s72
      %p81 = scmp.eq.s32.totalorder %s22, 1
      %p82 = por %p80, %p81
      %p83 = scmp.ne.s32.totalorder %s72, %s73
      %p84 = scmp.eq.s32.totalorder %s22, 0
      %p85 = por %p83, %p84
      %p86 = scmp.ne.s32.totalorder %s72, %s73
      %p87 = scmp.eq.s32.totalorder %s23, 1
      %p88 = por %p86, %p87
      %p90 = scmp.ne.s32.totalorder %s73, %s89
      %p91 = scmp.eq.s32.totalorder %s23, 0
      %p92 = por %p90, %p91
      %s93 = ssub.s32 %s17, %s24
      %p94 = scmp.eq.s32.totalorder %s93, 0
      %s96 = sadd.s32 %s95, 1
      %s97 = scalar_select %p94, %s95, %s96
      %p100 = pneg %p94
      %p101 = scmp.eq.s32.totalorder %s17, 1
      %p102 = por %p100, %p101
      %p103 = scmp.ne.s32.totalorder %s95, %s98
      %p104 = scmp.eq.s32.totalorder %s17, 0
      %p105 = por %p103, %p104
      %p106 = scmp.ne.s32.totalorder %s95, %s98
      %p107 = scmp.eq.s32.totalorder %s22, 1
      %p108 = por %p106, %p107
      %p109 = scmp.ne.s32.totalorder %s98, %s99
      %p110 = scmp.eq.s32.totalorder %s22, 0
      %p111 = por %p109, %p110
      %p112 = scmp.ne.s32.totalorder %s98, %s99
      %p113 = scmp.eq.s32.totalorder %s23, 1
      %p114 = por %p112, %p113
      %p116 = scmp.ne.s32.totalorder %s99, %s115
      %p117 = scmp.eq.s32.totalorder %s23, 0
      %p118 = por %p116, %p117
      %p119 = scmp.le.s32.totalorder 1, %s17
      %p120 = scmp.lt.s32.totalorder %s17, 3
      %p121 = pnand %p119, %p120
      %p122 = pneg %p121
      // Predicated region
      $region9: #{tpu_custom_call.1} parent=5 // pred_check
        _
      $region10: #{tpu_custom_call.1} parent=5 // pred_check_branch
        %124 = sbr.rel (%p121) target = $region12
      $region11: #{tpu_custom_call.1} parent=5 // pred_region
        %s125 = ssub.s32 %s17, 1
        // Predicated region
        $region13: #{tpu_custom_call.1} parent=11 // pred_check
          %p126 = pneg %p38
        $region14: #{tpu_custom_call.1} parent=11 // pred_check_branch
          %128 = sbr.rel (%p126) target = $region16
        $region15: #{tpu_custom_call.1} parent=11 // pred_region
          %s130 = ssub.s32 32, 32
          %131 = vsyncadd [#allocation5], %s130
          %134 = dma.hbm_to_smem %s0, 32, [#allocation2], [#allocation5]
        $region16: #{tpu_custom_call.1} parent=11 // pred_fallthru
          _
        // Predicated region
        $region17: #{tpu_custom_call.1} parent=11 // pred_check
          %p135 = pneg %p59
        $region18: #{tpu_custom_call.1} parent=11 // pred_check_branch
          %137 = sbr.rel (%p135) target = $region20
        $region19: #{tpu_custom_call.1} parent=11 // pred_region
          %s139 = ssub.s32 16, 16
          %140 = vsyncadd [#allocation6], %s139
          %s142 = sshll.u32 %s1, 4
          %s143 = int_to_ptr.vmem [resolvable:$true] %s142
          %145 = dma.vmem_to_smem %s143, 16, [#allocation7], [#allocation6]
        $region20: #{tpu_custom_call.1} parent=11 // pred_fallthru
          _
      $region12: #{tpu_custom_call.1} parent=5 // pred_fallthru
        _
      %p146 = scmp.lt.s32.totalorder %s17, 2
      // Predicated region
      $region21: #{tpu_custom_call.1} parent=5 // pred_check
        %p147 = pneg %p146
      $region22: #{tpu_custom_call.1} parent=5 // pred_check_branch
        %149 = sbr.rel (%p147) target = $region24
      $region23: #{tpu_custom_call.1} parent=5 // pred_region
        // Predicated region
        $region25: #{tpu_custom_call.1} parent=23 // pred_check
          %p150 = pneg %p79
        $region26: #{tpu_custom_call.1} parent=23 // pred_check_branch
          %152 = sbr.rel (%p150) target = $region28
        $region27: #{tpu_custom_call.1} parent=23 // pred_region
          %s153 = sand.u32 %s69, 1
          %s154 = scalar_lea.sflag [#allocation3], %s153
          %s155 = sand.u32 %s69, 1
          %s156 = smul.addr %s155, 16
          %s157 = scalar_lea.vmem [#allocation8], %s156
          %s158 = smul.u32 2, %s17
          %s160 = ssub.s32 256, 256
          %161 = vsyncadd %s154, %s160
          %s162 = smul.addr %s158, 128
          %s163 = scalar_lea.hbm %s2, %s162
          %s165 = sshll.u32 %s157, 4
          %s166 = int_to_ptr.vmem [resolvable:$true] %s165
          %168 = dma.hbm_to_vmem [thread:$0]  %s163, 256, %s166, %s154
        $region28: #{tpu_custom_call.1} parent=23 // pred_fallthru
          _
      $region24: #{tpu_custom_call.1} parent=5 // pred_fallthru
        _
      %p169 = scmp.le.s32.totalorder 1, %s17
      %p170 = scmp.lt.s32.totalorder %s17, 3
      %p171 = pnand %p169, %p170
      %p172 = pneg %p171
      // Predicated region
      $region29: #{tpu_custom_call.1} parent=5 // pred_check
        _
      $region30: #{tpu_custom_call.1} parent=5 // pred_check_branch
        %174 = sbr.rel (%p171) target = $region32
      $region31: #{tpu_custom_call.1} parent=5 // pred_region
        %s175 = ssub.s32 %s17, 1
        // Predicated region
        $region33: #{tpu_custom_call.1} parent=31 // pred_check
          %p176 = pneg %p38
        $region34: #{tpu_custom_call.1} parent=31 // pred_check_branch
          %178 = sbr.rel (%p176) target = $region36
        $region35: #{tpu_custom_call.1} parent=31 // pred_region
          %179 = dma.done [#allocation5], 32
        $region36: #{tpu_custom_call.1} parent=31 // pred_fallthru
          _
        // Predicated region
        $region37: #{tpu_custom_call.1} parent=31 // pred_check
          %p180 = pneg %p59
        $region38: #{tpu_custom_call.1} parent=31 // pred_check_branch
          %182 = sbr.rel (%p180) target = $region40
        $region39: #{tpu_custom_call.1} parent=31 // pred_region
          %183 = dma.done [#allocation6], 16
        $region40: #{tpu_custom_call.1} parent=31 // pred_fallthru
          _
        %s184 = sand.u32 %s72, 1
        %s185 = scalar_lea.sflag [#allocation3], %s184
        %s186 = sand.u32 %s72, 1
        %s187 = smul.addr %s186, 16
        %s188 = scalar_lea.vmem [#allocation8], %s187
        // Predicated region
        $region41: #{tpu_custom_call.1} parent=31 // pred_check
          %p189 = pneg %p85
        $region42: #{tpu_custom_call.1} parent=31 // pred_check_branch
          %191 = sbr.rel (%p189) target = $region44
        $region43: #{tpu_custom_call.1} parent=31 // pred_region
          %192 = dma.done %s185, 256
        $region44: #{tpu_custom_call.1} parent=31 // pred_fallthru
          _
        %193 = sfence
        %p194 = pneg %p38
        %p195 = pneg %p35
        %p196 = pneg %p59
        %p197 = pneg %p56
        %s198 = sand.u32 %s72, 1
        %s199 = scalar_lea.sflag [#allocation3], %s198
        %s200 = sand.u32 %s72, 1
        %s201 = smul.addr %s200, 16
        %s202 = scalar_lea.vmem [#allocation8], %s201
        %p203 = pneg %p85
        %p204 = pneg %p82
        %p205 = pneg %p111
        %p206 = pneg %p108
        %s207 = sand.u32 %s98, 1
        %s208 = scalar_lea.sflag [#allocation4], %s207
        %s209 = sand.u32 %s98, 1
        %s210 = smul.addr %s209, 4
        %s211 = scalar_lea.vmem [#allocation9], %s210
        %s212 = smul.u32 2, %s22
        %s213 = smul.u32 2, %s22
        %v214 = vld [vmem:[%s188] ss:$8 sm:$0x3]
        %s215 = scalar_lea.vmem %s188, 1 [#allocation8]
        %v216 = vld [vmem:[%s215] ss:$8 sm:$0x3]
        %s217 = scalar_lea.vmem %s188, 2 [#allocation8]
        %v218 = vld [vmem:[%s217] ss:$8 sm:$0x3]
        %s219 = scalar_lea.vmem %s188, 3 [#allocation8]
        %v220 = vld [vmem:[%s219] ss:$8 sm:$0x3]
        %s221 = scalar_lea.vmem %s188, 4 [#allocation8]
        %v222 = vld [vmem:[%s221] ss:$8 sm:$0x3]
        %s223 = sld [smem:[#allocation2]]
        %v224 = vstv %s223
        %v225 = vmul.f32 %v214, %v224
        %s226 = sld [smem:[#allocation2 + $0x1]]
        %v227 = vstv %s226
        %v228 = vmul.f32 %v216, %v227
        %v229 = vadd.f32 %v225, %v228
        %s230 = sld [smem:[#allocation2 + $0x2]]
        %v231 = vstv %s230
        %v232 = vmul.f32 %v218, %v231
        %v233 = vadd.f32 %v229, %v232
        %s234 = sld [smem:[#allocation2 + $0x3]]
        %v235 = vstv %s234
        %v236 = vmul.f32 %v220, %v235
        %v237 = vadd.f32 %v233, %v236
        %s238 = sld [smem:[#allocation2 + $0x4]]
        %v239 = vstv %s238
        %v240 = vmul.f32 %v222, %v239
        %v241 = vadd.f32 %v237, %v240
        %s242 = sld [smem:[#allocation7]]
        %v243 = vstv %s242
        %v244 = vadd.f32 %v241, %v243
        %s245 = sld [smem:[#allocation2 + $0x80]]
        %v246 = vstv %s245
        %v247 = vmul.f32 %v214, %v246
        %s248 = sld [smem:[#allocation2 + $0x81]]
        %v249 = vstv %s248
        %v250 = vmul.f32 %v216, %v249
        %v251 = vadd.f32 %v247, %v250
        %s252 = sld [smem:[#allocation2 + $0x82]]
        %v253 = vstv %s252
        %v254 = vmul.f32 %v218, %v253
        %v255 = vadd.f32 %v251, %v254
        %s256 = sld [smem:[#allocation2 + $0x83]]
        %v257 = vstv %s256
        %v258 = vmul.f32 %v220, %v257
        %v259 = vadd.f32 %v255, %v258
        %s260 = sld [smem:[#allocation2 + $0x84]]
        %v261 = vstv %s260
        %v262 = vmul.f32 %v222, %v261
        %v263 = vadd.f32 %v259, %v262
        %s264 = sld [smem:[#allocation7 + $0x1]]
        %v265 = vstv %s264
        %v266 = vadd.f32 %v263, %v265
        %v267 = vmax.f32 %v244, %v266
        %v268 = vsub.f32 %v244, %v266
        %v269 = vand.u32 2147483647, %v268
        %v270 = vsub.f32 0.0, %v269
        %v271 = vmul.f32 %v270, 1.442695
        %v272 = vpow.pop %v271
        %v273 = vadd.f32 %v272, 1.0
        %v274 = vlog2.pop %v273
        %v275 = vmul.f32 %v274, 0.6931472
        %v276 = vadd.f32 %v267, %v275
        %v277 = vsub.f32 %v244, %v276
        %v278 = vsub.f32 %v266, %v276
        %v280 = vlaneseq
        %v281 = vshrl.u32 %v280, 7
        %v282 = vsub.s32 0, %v281
        %v283 = vrot.slane %v277, %v282
        %v284 = vlaneseq
        %v285 = vshrl.u32 %v284, 7
        %v286 = vsub.s32 1, %v285
        %v287 = vrot.slane %v277, %v286
        %v291 = vlaneseq
        %v292 = vshrl.u32 %v291, 7
        %v293 = vsub.s32 0, %v292
        %v294 = vrot.slane %v278, %v293
        %v295 = vlaneseq
        %v296 = vshrl.u32 %v295, 7
        %v297 = vsub.s32 1, %v296
        %v298 = vrot.slane %v278, %v297
        %vm301 = vcmask 1040384
        %v302 = vsel %vm301, %v283, %v294
        %v303 = vsel %vm301, %v287, %v298
        %v306 = vcombine.low %v302, %v303
        %v308 = vunpack.c.l.s4 1983009808
        %v309 = vunpack.c.0.s8 %v308
        %v310 = vlaneseq
        %v311 = vshrl.u32 %v310, 7
        %v312 = vsub.s32 %v309, %v311
        %v313 = vrot.slane %v306, %v312
        %315 = vst [vmem:[%s211] sm:$0xf] %v313
        %s316 = sand.u32 %s98, 1
        %s317 = scalar_lea.sflag [#allocation4], %s316
        %s318 = sand.u32 %s98, 1
        %s319 = smul.addr %s318, 4
        %s320 = scalar_lea.vmem [#allocation9], %s319
        // Predicated region
        $region45: #{tpu_custom_call.1} parent=31 // pred_check
          %p321 = pneg %p108
        $region46: #{tpu_custom_call.1} parent=31 // pred_check_branch
          %323 = sbr.rel (%p321) target = $region48
        $region47: #{tpu_custom_call.1} parent=31 // pred_region
          %s324 = smul.u32 2, %s22
          %s326 = ssub.s32 64, 64
          %327 = vsyncadd %s317, %s326
          %s328 = smul.addr %s324, 32
          %s329 = scalar_lea.hbm %s3, %s328
          %s331 = sshll.u32 %s320, 4
          %s332 = int_to_ptr.vmem [resolvable:$true] %s331
          %334 = dma.vmem_to_hbm [thread:$0]  %s332, 64, %s329, %s317
        $region48: #{tpu_custom_call.1} parent=31 // pred_fallthru
          _
      $region32: #{tpu_custom_call.1} parent=5 // pred_fallthru
        _
      %p335 = scmp.le.s32.totalorder 2, %s17
      // Predicated region
      $region49: #{tpu_custom_call.1} parent=5 // pred_check
        %p336 = pneg %p335
      $region50: #{tpu_custom_call.1} parent=5 // pred_check_branch
        %338 = sbr.rel (%p336) target = $region52
      $region51: #{tpu_custom_call.1} parent=5 // pred_region
        %s339 = ssub.s32 %s17, 2
        // Predicated region
        $region53: #{tpu_custom_call.1} parent=51 // pred_check
          %p340 = pneg %p114
        $region54: #{tpu_custom_call.1} parent=51 // pred_check_branch
          %342 = sbr.rel (%p340) target = $region56
        $region55: #{tpu_custom_call.1} parent=51 // pred_region
          %s343 = sand.u32 %s99, 1
          %s344 = scalar_lea.sflag [#allocation4], %s343
          %s345 = sand.u32 %s99, 1
          %s346 = smul.addr %s345, 4
          %s347 = scalar_lea.vmem [#allocation9], %s346
          %348 = dma.done %s344, 64
        $region56: #{tpu_custom_call.1} parent=51 // pred_fallthru
          _
      $region52: #{tpu_custom_call.1} parent=5 // pred_fallthru
        _
    $region6: #{tpu_custom_call.1} parent=1 // loop_footer
      %s21 = sadd.s32 1, %s17
    $region7: #{tpu_custom_call.1} parent=1 // loop_footer_branch
      %16 = sbr.rel target = $region3
    $region8: #{tpu_custom_call.1} parent=1 // loop_exit
      _
    %349 = vsyncpa [#allocation3], 1
    %s350 = scalar_lea.sflag [#allocation3], 1
    %351 = vsyncpa %s350, 1
    %352 = vsyncpa [#allocation4], 1
    %s353 = scalar_lea.sflag [#allocation4], 1
    %354 = vsyncpa %s353, 1
    %355 = vsyncpa [#allocation5], 1
    %s356 = scalar_lea.sflag [#allocation5], 1
    %357 = vsyncpa %s356, 1
    %358 = vsyncpa [#allocation6], 1
    %s359 = scalar_lea.sflag [#allocation6], 1
    %360 = vsyncpa %s359, 1

</llo_original>
